<compile_context>
chip_gen: v5e
topology: v5e:2x2
jax: 0.10.0
libtpu: 0.0.40
codegen_flags: <defaults>
</compile_context>

<pallas_src>
import jax
import jax.numpy as jnp
from jax import lax
from jax.experimental import pallas as pl
from jax.experimental.pallas import tpu as pltpu


# ------------------------------ fused kernel --------------------------------


def _dash_fused_kernel(x_ref, g1_ref, b1_ref, g2_ref, b2_ref, o_ref, xp1, xp2):
    """Fused conv1 -> conv2 for the whole (small) batch in one invocation.

    x_ref : (B, H, C*W)         lane-dense input, lane index = ci*W + w
    g1_ref: (KH*C*W, C1*W)      banded conv1 weights, stacked over KH (im2col)
    b1_ref: (1, C1*W)           conv1 bias repeated along W
    g2_ref: (KH*C1*W, C*W)      banded conv2 weights, stacked over KH
    b2_ref: (1, C*W)            conv2 bias repeated along W
    o_ref : (B, H, C*W)         lane-dense output
    xp1   : (B, Hp, C*W)  VMEM  H-padded conv1 input
    xp2   : (B, Hp, C1*W) VMEM  H-padded conv1 output == conv2 input
    """
    B, H, N0 = x_ref.shape
    Hp = xp1.shape[1]
    ph = (Hp - H) // 2
    KH = g1_ref.shape[0] // N0
    N1 = xp2.shape[2]
    N2 = o_ref.shape[2]
    M = B * H

    # ---- Stage 0: H-pad the lane-dense input (only halo rows are zeroed). --
    if ph > 0:
        xp1[:, 0:ph, :] = jnp.zeros((B, ph, N0), jnp.float32)
        xp1[:, ph + H:Hp, :] = jnp.zeros((B, ph, N0), jnp.float32)
    xp1[:, ph:ph + H, :] = x_ref[...].astype(jnp.float32)

    # ---- Stage 1: conv1 == ONE MXU matmul over the im2col-over-KH operand. -
    im1 = jnp.concatenate([xp1[:, kh:kh + H, :] for kh in range(KH)], axis=-1)
    y1 = jnp.dot(im1.reshape(M, KH * N0), g1_ref[...],
                 preferred_element_type=jnp.float32) + b1_ref[...]

    # ---- Stage 1b: H-pad conv1 output for conv2 (halo rows only). ----------
    if ph > 0:
        xp2[:, 0:ph, :] = jnp.zeros((B, ph, N1), jnp.float32)
        xp2[:, ph + H:Hp, :] = jnp.zeros((B, ph, N1), jnp.float32)
    xp2[:, ph:ph + H, :] = y1.reshape(B, H, N1)

    # ---- Stage 2: conv2 == ONE matmul; lane-dense output store. ------------
    im2 = jnp.concatenate([xp2[:, kh:kh + H, :] for kh in range(KH)], axis=-1)
    y2 = jnp.dot(im2.reshape(M, KH * N1), g2_ref[...],
                 preferred_element_type=jnp.float32) + b2_ref[...]
    o_ref[...] = y2.reshape(B, H, N2).astype(o_ref.dtype)


# --------------------------- parameter packing ------------------------------


def _band_matrix(wt, W):
    """Fold the width-axis taps AND the W zero-padding of a (Cout, Cin, KH, KW)
    conv kernel into a banded matrix:
        G[kh, ci*W + wi, co*W + wo] = wt[co, ci, kh, wi - wo + pw]
    inside the band (zero elsewhere / clipped at the W edges)."""
    Cout, Cin, KH, KW = wt.shape
    pw = KW // 2
    d = jnp.arange(W)[:, None] - jnp.arange(W)[None, :] + pw      # (W_in, W_out)
    valid = (d >= 0) & (d < KW)
    taps = wt[:, :, :, jnp.clip(d, 0, KW - 1)]                    # (Cout,Cin,KH,Wi,Wo)
    taps = jnp.where(valid[None, None, None], taps, 0.0)
    return jnp.transpose(taps, (2, 1, 3, 0, 4)).reshape(KH, Cin * W, Cout * W)


def pack_dash_params(params, time_steps):
    """One-time weight folding (layout prep at module-init time).

    Produces stacked banded weight matrices so each conv layer is exactly one
    lane-dense MXU matmul against an im2col-over-KH operand inside the fused
    kernel.  W zero-padding is folded into the band (clipped at the edges)."""
    w1, b1 = params["w1"], params["b1"]          # (C1, C, KH, KW), (C1,)
    w2, b2 = params["w2"], params["b2"]          # (C, C1, KH, KW), (C,)
    C1, C, KH, KW = w1.shape
    W = time_steps

    g1 = _band_matrix(w1, W).reshape(KH * C * W, C1 * W)
    g2 = _band_matrix(w2, W).reshape(KH * C1 * W, C * W)
    b1r = jnp.repeat(b1, W).reshape(1, C1 * W)
    b2r = jnp.repeat(b2, W).reshape(1, C * W)
    return {"g1": g1, "b1": b1r, "g2": g2, "b2": b2r}


# ------------------------------- wrappers ------------------------------------


def dash_fused(x_nchw, packed):
    B, C, H, W = x_nchw.shape
    g1, b1 = packed["g1"], packed["b1"]
    g2, b2 = packed["g2"], packed["b2"]
    N0 = C * W
    # Packed weights are specialized to (C, W); fail loudly on a mismatch.
    assert g1.shape[0] % N0 == 0, "packed weights do not match x's (C, W)"
    KH = g1.shape[0] // N0
    assert g1.shape[1] % W == 0, "packed weights do not match x's W"
    C1 = g1.shape[1] // W
    N1 = C1 * W
    assert g2.shape == (KH * N1, N0), "packed weights do not match x's (C, W)"
    Hp = H + KH - 1                        # "same" padding along H (odd KH)

    # Lane-dense layout (tiny XLA ops): NCHW -> (B, H, C*W).
    x_ld = jnp.transpose(x_nchw, (0, 2, 1, 3)).reshape(B, H, N0)

    flops = 2 * B * H * (KH * N0) * N1 + 2 * B * H * (KH * N1) * N0
    bytes_accessed = 4 * (x_ld.size + g1.size + b1.size + g2.size + b2.size
                          + B * H * N0)

    out_ld = pl.pallas_call(
        _dash_fused_kernel,
        out_shape=jax.ShapeDtypeStruct((B, H, N0), x_nchw.dtype),
        # No grid: whole problem fits comfortably in VMEM on all generations,
        # so a single invocation avoids per-grid-step pipeline overhead.
        in_specs=[pl.BlockSpec(memory_space=pltpu.MemorySpace.VMEM)] * 5,
        out_specs=pl.BlockSpec(memory_space=pltpu.MemorySpace.VMEM),
        scratch_shapes=[
            pltpu.VMEM((B, Hp, N0), jnp.float32),
            pltpu.VMEM((B, Hp, N1), jnp.float32),
        ],
        cost_estimate=pl.CostEstimate(flops=flops, transcendentals=0,
                                      bytes_accessed=bytes_accessed),
    )(x_ld, g1, b1, g2, b2)

    # Lane-dense -> NCHW (tiny XLA op in the wrapper).
    return jnp.transpose(out_ld.reshape(B, H, C, W), (0, 2, 1, 3))


@jax.jit
def dash_forward(x_nchw, packed):
    # Entire forward pass = one pallas_call + two tiny layout transposes.
    return dash_fused(x_nchw, packed)


# ------------------------------ reference ------------------------------------


def init_dash_params(key, num_channels):
    """Deterministic synthetic parameters in PyTorch Conv2d (OIHW) layout."""
    k1, k2, k3, k4 = jax.random.split(key, 4)
    kh, kw = 3, 25
    w1 = jax.random.normal(k1, (4, num_channels, kh, kw), jnp.float32) * 0.05
    b1 = jax.random.normal(k2, (4,), jnp.float32) * 0.05
    w2 = jax.random.normal(k3, (num_channels, 4, kh, kw), jnp.float32) * 0.05
    b2 = jax.random.normal(k4, (num_channels,), jnp.float32) * 0.05
    return {"w1": w1, "b1": b1, "w2": w2, "b2": b2}


def _conv_ref_nchw(x, w, b):
    KH, KW = w.shape[2], w.shape[3]
    out = lax.conv_general_dilated(
        x, w, window_strides=(1, 1),
        padding=((KH // 2, KH // 2), (KW // 2, KW // 2)),
        dimension_numbers=("NCHW", "OIHW", "NCHW"))
    return out + b[None, :, None, None]


def dash_reference(x_nchw, params):
    x = _conv_ref_nchw(x_nchw, params["w1"], params["b1"])
    x = _conv_ref_nchw(x, params["w2"], params["b2"])
    return x


# --------------------------------- main ---------------------------------------


if __name__ == "__main__":
    batch, num_channels, num_freq_bins, time_steps = 2, 4, 16, 16

    key = jax.random.PRNGKey(0)
    kx, kp = jax.random.split(key)
    x = jax.random.normal(
        kx, (batch, num_channels, num_freq_bins, time_steps), jnp.float32)
    params = init_dash_params(kp, num_channels)
    packed = pack_dash_params(params, time_steps)   # one-time weight folding

    out = dash_forward(x, packed)
    out = jax.block_until_ready(out)

    ref = dash_reference(x, params)
    assert out.shape == (batch, num_channels, num_freq_bins, time_steps)
    max_err = float(jnp.max(jnp.abs(out - ref)))
    assert jnp.allclose(out, ref, atol=1e-4, rtol=1e-4), f"max_err={max_err}"

    print("KERNEL_OK")
</pallas_src>

<mosaic_0001>
module attributes {stable_mosaic.version = 11 : i64} {
  func.func @_dash_fused_kernel(%arg0: memref<2x16x64xf32, #tpu.memory_space<vmem>>, %arg1: memref<192x64xf32, #tpu.memory_space<vmem>>, %arg2: memref<1x64xf32, #tpu.memory_space<vmem>>, %arg3: memref<192x64xf32, #tpu.memory_space<vmem>>, %arg4: memref<1x64xf32, #tpu.memory_space<vmem>>, %arg5: memref<2x16x64xf32, #tpu.memory_space<vmem>>, %arg6: memref<2x18x64xf32, #tpu.memory_space<vmem>>, %arg7: memref<2x18x64xf32, #tpu.memory_space<vmem>>) attributes {dimension_semantics = [], scalar_prefetch = 0 : i64, scratch_operands = 2 : i64, tpu.core_type = #tpu.core_type<tc>} {
    %cst = arith.constant 0.000000e+00 : f32
    %0 = vector.broadcast %cst : f32 to vector<2x1x64xf32>
    %c0 = arith.constant 0 : index
    %c0_0 = arith.constant 0 : index
    %c0_1 = arith.constant 0 : index
    %1 = vector.load %arg6[%c0, %c0_0, %c0_1] : memref<2x18x64xf32, #tpu.memory_space<vmem>>, vector<2x1x64xf32>
    tpu.vector_store %arg6[%c0, %c0_0, %c0_1], %0 {strides = array<i32>} : memref<2x18x64xf32, #tpu.memory_space<vmem>>, vector<2x1x64xf32>,
    %cst_2 = arith.constant 0.000000e+00 : f32
    %2 = vector.broadcast %cst_2 : f32 to vector<2x1x64xf32>
    %c0_3 = arith.constant 0 : index
    %c17 = arith.constant 17 : index
    %c0_4 = arith.constant 0 : index
    %3 = vector.load %arg6[%c0_3, %c17, %c0_4] : memref<2x18x64xf32, #tpu.memory_space<vmem>>, vector<2x1x64xf32>
    tpu.vector_store %arg6[%c0_3, %c17, %c0_4], %2 {strides = array<i32>} : memref<2x18x64xf32, #tpu.memory_space<vmem>>, vector<2x1x64xf32>,
    %c0_5 = arith.constant 0 : index
    %c0_6 = arith.constant 0 : index
    %c0_7 = arith.constant 0 : index
    %4 = vector.load %arg0[%c0_5, %c0_6, %c0_7] : memref<2x16x64xf32, #tpu.memory_space<vmem>>, vector<2x16x64xf32>
    %c0_8 = arith.constant 0 : index
    %c1 = arith.constant 1 : index
    %c0_9 = arith.constant 0 : index
    %5 = vector.load %arg6[%c0_8, %c1, %c0_9] : memref<2x18x64xf32, #tpu.memory_space<vmem>>, vector<2x16x64xf32>
    tpu.vector_store %arg6[%c0_8, %c1, %c0_9], %4 {strides = array<i32>} : memref<2x18x64xf32, #tpu.memory_space<vmem>>, vector<2x16x64xf32>,
    %c0_10 = arith.constant 0 : index
    %c0_11 = arith.constant 0 : index
    %c0_12 = arith.constant 0 : index
    %6 = vector.load %arg6[%c0_10, %c0_11, %c0_12] : memref<2x18x64xf32, #tpu.memory_space<vmem>>, vector<2x16x64xf32>
    %c0_13 = arith.constant 0 : index
    %c1_14 = arith.constant 1 : index
    %c0_15 = arith.constant 0 : index
    %7 = vector.load %arg6[%c0_13, %c1_14, %c0_15] : memref<2x18x64xf32, #tpu.memory_space<vmem>>, vector<2x16x64xf32>
    %c0_16 = arith.constant 0 : index
    %c2 = arith.constant 2 : index
    %c0_17 = arith.constant 0 : index
    %8 = vector.load %arg6[%c0_16, %c2, %c0_17] : memref<2x18x64xf32, #tpu.memory_space<vmem>>, vector<2x16x64xf32>
    %9 = tpu.concatenate %6, %7, %8 in 2 : vector<2x16x64xf32>, vector<2x16x64xf32>, vector<2x16x64xf32> -> vector<2x16x192xf32>
    %10 = vector.shape_cast %9 : vector<2x16x192xf32> to vector<32x192xf32>
    %c0_18 = arith.constant 0 : index
    %c0_19 = arith.constant 0 : index
    %11 = vector.load %arg1[%c0_18, %c0_19] : memref<192x64xf32, #tpu.memory_space<vmem>>, vector<192x64xf32>
    %cst_20 = arith.constant dense<0.000000e+00> : vector<32x64xf32>
    %12 = tpu.matmul %10, %11, %cst_20 {dimension_numbers = #tpu.dot_dimension_numbers<[1], [0], [0], [1], [0, 0, 1, 1], [], []>} : vector<32x192xf32>, vector<192x64xf32>, vector<32x64xf32> -> vector<32x64xf32>
    %c0_21 = arith.constant 0 : index
    %c0_22 = arith.constant 0 : index
    %13 = vector.load %arg2[%c0_21, %c0_22] : memref<1x64xf32, #tpu.memory_space<vmem>>, vector<1x64xf32>
    %14 = vector.broadcast %13 : vector<1x64xf32> to vector<32x64xf32>
    %15 = arith.addf %12, %14 : vector<32x64xf32>
    %cst_23 = arith.constant 0.000000e+00 : f32
    %16 = vector.broadcast %cst_23 : f32 to vector<2x1x64xf32>
    %c0_24 = arith.constant 0 : index
    %c0_25 = arith.constant 0 : index
    %c0_26 = arith.constant 0 : index
    %17 = vector.load %arg7[%c0_24, %c0_25, %c0_26] : memref<2x18x64xf32, #tpu.memory_space<vmem>>, vector<2x1x64xf32>
    tpu.vector_store %arg7[%c0_24, %c0_25, %c0_26], %16 {strides = array<i32>} : memref<2x18x64xf32, #tpu.memory_space<vmem>>, vector<2x1x64xf32>,
    %cst_27 = arith.constant 0.000000e+00 : f32
    %18 = vector.broadcast %cst_27 : f32 to vector<2x1x64xf32>
    %c0_28 = arith.constant 0 : index
    %c17_29 = arith.constant 17 : index
    %c0_30 = arith.constant 0 : index
    %19 = vector.load %arg7[%c0_28, %c17_29, %c0_30] : memref<2x18x64xf32, #tpu.memory_space<vmem>>, vector<2x1x64xf32>
    tpu.vector_store %arg7[%c0_28, %c17_29, %c0_30], %18 {strides = array<i32>} : memref<2x18x64xf32, #tpu.memory_space<vmem>>, vector<2x1x64xf32>,
    %20 = vector.shape_cast %15 : vector<32x64xf32> to vector<2x16x64xf32>
    %c0_31 = arith.constant 0 : index
    %c1_32 = arith.constant 1 : index
    %c0_33 = arith.constant 0 : index
    %21 = vector.load %arg7[%c0_31, %c1_32, %c0_33] : memref<2x18x64xf32, #tpu.memory_space<vmem>>, vector<2x16x64xf32>
    tpu.vector_store %arg7[%c0_31, %c1_32, %c0_33], %20 {strides = array<i32>} : memref<2x18x64xf32, #tpu.memory_space<vmem>>, vector<2x16x64xf32>,
    %c0_34 = arith.constant 0 : index
    %c0_35 = arith.constant 0 : index
    %c0_36 = arith.constant 0 : index
    %22 = vector.load %arg7[%c0_34, %c0_35, %c0_36] : memref<2x18x64xf32, #tpu.memory_space<vmem>>, vector<2x16x64xf32>
    %c0_37 = arith.constant 0 : index
    %c1_38 = arith.constant 1 : index
    %c0_39 = arith.constant 0 : index
    %23 = vector.load %arg7[%c0_37, %c1_38, %c0_39] : memref<2x18x64xf32, #tpu.memory_space<vmem>>, vector<2x16x64xf32>
    %c0_40 = arith.constant 0 : index
    %c2_41 = arith.constant 2 : index
    %c0_42 = arith.constant 0 : index
    %24 = vector.load %arg7[%c0_40, %c2_41, %c0_42] : memref<2x18x64xf32, #tpu.memory_space<vmem>>, vector<2x16x64xf32>
    %25 = tpu.concatenate %22, %23, %24 in 2 : vector<2x16x64xf32>, vector<2x16x64xf32>, vector<2x16x64xf32> -> vector<2x16x192xf32>
    %26 = vector.shape_cast %25 : vector<2x16x192xf32> to vector<32x192xf32>
    %c0_43 = arith.constant 0 : index
    %c0_44 = arith.constant 0 : index
    %27 = vector.load %arg3[%c0_43, %c0_44] : memref<192x64xf32, #tpu.memory_space<vmem>>, vector<192x64xf32>
    %cst_45 = arith.constant dense<0.000000e+00> : vector<32x64xf32>
    %28 = tpu.matmul %26, %27, %cst_45 {dimension_numbers = #tpu.dot_dimension_numbers<[1], [0], [0], [1], [0, 0, 1, 1], [], []>} : vector<32x192xf32>, vector<192x64xf32>, vector<32x64xf32> -> vector<32x64xf32>
    %c0_46 = arith.constant 0 : index
    %c0_47 = arith.constant 0 : index
    %29 = vector.load %arg4[%c0_46, %c0_47] : memref<1x64xf32, #tpu.memory_space<vmem>>, vector<1x64xf32>
    %30 = vector.broadcast %29 : vector<1x64xf32> to vector<32x64xf32>
    %31 = arith.addf %28, %30 : vector<32x64xf32>
    %32 = vector.shape_cast %31 : vector<32x64xf32> to vector<2x16x64xf32>
    %c0_48 = arith.constant 0 : index
    %c0_49 = arith.constant 0 : index
    %c0_50 = arith.constant 0 : index
    %33 = vector.load %arg5[%c0_48, %c0_49, %c0_50] : memref<2x16x64xf32, #tpu.memory_space<vmem>>, vector<2x16x64xf32>
    tpu.vector_store %arg5[%c0_48, %c0_49, %c0_50], %32 {strides = array<i32>} : memref<2x16x64xf32, #tpu.memory_space<vmem>>, vector<2x16x64xf32>,
    return
  }
}

</mosaic_0001>

<llo_original>
// kernel: dash_forward.1
$region0: #{dash_forward.1}
  #allocation0 [shape = 'u32[]', space=smem, size = 0x4, offset = 0x4, fixed_abs, tag = 'smem constant byte address 0x4 - core index']
  #allocation1 [shape = 'u32[72,128]{1,0:T(1,128)}', space=vmem, size = 0x9000, scoped, tag = 'internal scratch']
  #allocation2 [shape = 'f32[2,18,64]{2,1,0:T(8,128)}', space=vmem, size = 0x6000, scoped, tag = 'scratch operand']
  #allocation3 [shape = 'f32[2,18,64]{2,1,0:T(8,128)}', space=vmem, size = 0x6000, scoped, tag = 'scratch operand']
  %s0 = inlined_call_operand.vmem [shape: f32[2,16,64], index: 0, kind: input, shape index: {}]
  %s1 = inlined_call_operand.vmem [shape: f32[192,64], index: 1, kind: input, shape index: {}]
  %s2 = inlined_call_operand.vmem [shape: f32[1,64], index: 2, kind: input, shape index: {}]
  %s3 = inlined_call_operand.vmem [shape: f32[192,64], index: 3, kind: input, shape index: {}]
  %s4 = inlined_call_operand.vmem [shape: f32[1,64], index: 4, kind: input, shape index: {}]
  %s5 = inlined_call_operand.vmem [shape: f32[2,16,64], index: 5, kind: output, shape index: {}]
  %s6 = sld [smem:[#allocation0]]
  $region30: #{dash_forward.1} parent=0
    _
  %s8 = ssub.s32 1, %s6
  %s9 = scalar_select 0, %s8, %s6
  // Predicated region
  $region2: #{dash_forward.1} parent=0 // pred_check
    _
  $region3: #{dash_forward.1} parent=0 // pred_check_branch
    %11 = sbr.rel (0) target = $region5
  $region4: #{dash_forward.1} parent=0 // pred_region
    _
  $region5: #{dash_forward.1} parent=0 // pred_fallthru
    _
  // Predicated region
  $region6: #{dash_forward.1} parent=0 // pred_check
    _
  $region7: #{dash_forward.1} parent=0 // pred_check_branch
    %13 = sbr.rel (0) target = $region9
  $region8: #{dash_forward.1} parent=0 // pred_region
    _
  $region9: #{dash_forward.1} parent=0 // pred_fallthru
    _
  // Predicated region
  $region10: #{dash_forward.1} parent=0 // pred_check
    _
  $region11: #{dash_forward.1} parent=0 // pred_check_branch
    %15 = sbr.rel (0) target = $region13
  $region12: #{dash_forward.1} parent=0 // pred_region
    _
  $region13: #{dash_forward.1} parent=0 // pred_fallthru
    _
  // Predicated region
  $region14: #{dash_forward.1} parent=0 // pred_check
    _
  $region15: #{dash_forward.1} parent=0 // pred_check_branch
    %17 = sbr.rel (0) target = $region17
  $region16: #{dash_forward.1} parent=0 // pred_region
    _
  $region17: #{dash_forward.1} parent=0 // pred_fallthru
    _
  // Predicated region
  $region18: #{dash_forward.1} parent=0 // pred_check
    _
  $region19: #{dash_forward.1} parent=0 // pred_check_branch
    %19 = sbr.rel (0) target = $region21
  $region20: #{dash_forward.1} parent=0 // pred_region
    _
  $region21: #{dash_forward.1} parent=0 // pred_fallthru
    _
  %vm20 = vcmask 516096
  %21 = vst.msk [vmem:[#allocation2] sm:$0x1] %vm20, 0.0
  %22 = vst.msk [vmem:[#allocation2 + $0x18] sm:$0x1] %vm20, 0.0
  %23 = vst.msk [vmem:[#allocation2 + $0x11] sm:$0x1] %vm20, 0.0
  %24 = vst.msk [vmem:[#allocation2 + $0x29] sm:$0x1] %vm20, 0.0
  %v25 = vld [vmem:[%s0] sm:$0xff]
  %v26 = vld [vmem:[%s0 + $0x8] sm:$0xff]
  %v27 = vld [vmem:[%s0 + $0x10] sm:$0xff]
  %v28 = vld [vmem:[%s0 + $0x18] sm:$0xff]
  %vm29 = vcmask 523264
  %30 = vst.msk [vmem:[#allocation2 + $0x1] sm:$0xff] %vm29, %v25
  %31 = vst.msk [vmem:[#allocation2 + $0x9] sm:$0xff] %vm29, %v26
  %32 = vst.msk [vmem:[#allocation2 + $0x19] sm:$0xff] %vm29, %v27
  %33 = vst.msk [vmem:[#allocation2 + $0x21] sm:$0xff] %vm29, %v28
  %v34 = vld [vmem:[#allocation2] sm:$0xff]
  %v35 = vld [vmem:[#allocation2 + $0x8] sm:$0xff]
  %v36 = vld [vmem:[#allocation2 + $0x18] sm:$0xff]
  %v37 = vld [vmem:[#allocation2 + $0x20] sm:$0xff]
  %v38 = vld [vmem:[#allocation2 + $0x1] sm:$0xff]
  %v39 = vld [vmem:[#allocation2 + $0x9] sm:$0xff]
  %v40 = vld [vmem:[#allocation2 + $0x19] sm:$0xff]
  %v41 = vld [vmem:[#allocation2 + $0x21] sm:$0xff]
  %v42 = vld [vmem:[#allocation2 + $0x2] sm:$0xff]
  %v43 = vld [vmem:[#allocation2 + $0xa] sm:$0xff]
  %v44 = vld [vmem:[#allocation2 + $0x1a] sm:$0xff]
  %v45 = vld [vmem:[#allocation2 + $0x22] sm:$0xff]
  %50 = vrot.lane.b32.xlu0 %v38, 64
  %v51 = vpop.permute.xlu0 %50
  %52 = vrot.lane.b32.xlu0 %v39, 64
  %v53 = vpop.permute.xlu0 %52
  %54 = vrot.lane.b32.xlu0 %v40, 64
  %v55 = vpop.permute.xlu0 %54
  %56 = vrot.lane.b32.xlu0 %v41, 64
  %v57 = vpop.permute.xlu0 %56
  %v62 = vsel %vm29, %v34, %v51
  %v63 = vsel %vm29, %v35, %v53
  %v64 = vsel %vm29, %v36, %v55
  %v65 = vsel %vm29, %v37, %v57
  %v66 = vld [vmem:[%s1] sm:$0xff]
  %v67 = vld [vmem:[%s1 + $0x8] sm:$0xff]
  %v68 = vld [vmem:[%s1 + $0x10] sm:$0xff]
  %v69 = vld [vmem:[%s1 + $0x18] sm:$0xff]
  %v70 = vld [vmem:[%s1 + $0x20] sm:$0xff]
  %v71 = vld [vmem:[%s1 + $0x28] sm:$0xff]
  %v72 = vld [vmem:[%s1 + $0x30] sm:$0xff]
  %v73 = vld [vmem:[%s1 + $0x38] sm:$0xff]
  %v74 = vld [vmem:[%s1 + $0x40] sm:$0xff]
  %v75 = vld [vmem:[%s1 + $0x48] sm:$0xff]
  %v76 = vld [vmem:[%s1 + $0x50] sm:$0xff]
  %v77 = vld [vmem:[%s1 + $0x58] sm:$0xff]
  %v78 = vld [vmem:[%s1 + $0x60] sm:$0xff]
  %v79 = vld [vmem:[%s1 + $0x68] sm:$0xff]
  %v80 = vld [vmem:[%s1 + $0x70] sm:$0xff]
  %v81 = vld [vmem:[%s1 + $0x78] sm:$0xff]
  %v82 = vld [vmem:[%s1 + $0x80] sm:$0xff]
  %v83 = vld [vmem:[%s1 + $0x88] sm:$0xff]
  %v84 = vld [vmem:[%s1 + $0x90] sm:$0xff]
  %v85 = vld [vmem:[%s1 + $0x98] sm:$0xff]
  %v86 = vld [vmem:[%s1 + $0xa0] sm:$0xff]
  %v87 = vld [vmem:[%s1 + $0xa8] sm:$0xff]
  %v88 = vld [vmem:[%s1 + $0xb0] sm:$0xff]
  %v89 = vld [vmem:[%s1 + $0xb8] sm:$0xff]
  %v90 = vld [vmem:[%s2] sm:$0x1]
  %v92 = vperm.slane %v90, 0
  %v95 = vsel %vm29, %v42, 0
  %v98 = vsel %vm29, %v43, 0
  %v101 = vsel %vm29, %v44, 0
  %v104 = vsel %vm29, %v45, 0
  %106 = vmatpush.msra.mxu0 %v81
  %107 = vmatpush.msra.mxu0 %v80
  %108 = vmatpush.msra.mxu0 %v79
  %109 = vmatpush.msra.mxu0 %v78
  %110 = vmatpush.msra.mxu0 %v77
  %111 = vmatpush.msra.mxu0 %v76
  %112 = vmatpush.msra.mxu0 %v75
  %113 = vmatpush.msra.mxu0 %v74
  %114 = vmatpush.msra.mxu0 %v73
  %115 = vmatpush.msra.mxu0 %v72
  %116 = vmatpush.msra.mxu0 %v71
  %117 = vmatpush.msra.mxu0 %v70
  %118 = vmatpush.msra.mxu0 %v69
  %119 = vmatpush.msra.mxu0 %v68
  %120 = vmatpush.msra.mxu0 %v67
  %121 = vmatpush.msra.mxu0 %v66
  %122 = vmatmul.f32.gmra.mxu0 %v62
  %v123 = vpop.f32.mrf.mxu0
  %v124 = vadd.f32 %v92, %v123
  %125 = vmatmul.f32.gmra.mxu0 %v63
  %v126 = vpop.f32.mrf.mxu0
  %v127 = vadd.f32 %v92, %v126
  %128 = vmatmul.f32.gmra.mxu0 %v64
  %v129 = vpop.f32.mrf.mxu0
  %v130 = vadd.f32 %v92, %v129
  %131 = vmatmul.f32.gmra.mxu0 %v65
  %v132 = vpop.f32.mrf.mxu0
  %v133 = vadd.f32 %v92, %v132
  %134 = vdwg.mxu0
  %135 = vmatpush.msra.mxu0 0.0
  %136 = vmatpush.msra.mxu0 0.0
  %137 = vmatpush.msra.mxu0 0.0
  %138 = vmatpush.msra.mxu0 0.0
  %139 = vmatpush.msra.mxu0 0.0
  %140 = vmatpush.msra.mxu0 0.0
  %141 = vmatpush.msra.mxu0 0.0
  %142 = vmatpush.msra.mxu0 0.0
  %143 = vmatpush.msra.mxu0 %v89
  %144 = vmatpush.msra.mxu0 %v88
  %145 = vmatpush.msra.mxu0 %v87
  %146 = vmatpush.msra.mxu0 %v86
  %147 = vmatpush.msra.mxu0 %v85
  %148 = vmatpush.msra.mxu0 %v84
  %149 = vmatpush.msra.mxu0 %v83
  %150 = vmatpush.msra.mxu0 %v82
  %151 = vmatmul.f32.gmra.mxu0 %v95
  %v152 = vpop.f32.mrf.mxu0
  %v153 = vadd.f32 %v124, %v152
  %154 = vmatmul.f32.gmra.mxu0 %v98
  %v155 = vpop.f32.mrf.mxu0
  %v156 = vadd.f32 %v127, %v155
  %157 = vmatmul.f32.gmra.mxu0 %v101
  %v158 = vpop.f32.mrf.mxu0
  %v159 = vadd.f32 %v130, %v158
  %160 = vmatmul.f32.gmra.mxu0 %v104
  %v161 = vpop.f32.mrf.mxu0
  %v162 = vadd.f32 %v133, %v161
  %163 = vdwg.mxu0
  %164 = vst.msk [vmem:[#allocation3] sm:$0x1] %vm20, 0.0
  %165 = vst.msk [vmem:[#allocation3 + $0x18] sm:$0x1] %vm20, 0.0
  %166 = vst.msk [vmem:[#allocation3 + $0x11] sm:$0x1] %vm20, 0.0
  %167 = vst.msk [vmem:[#allocation3 + $0x29] sm:$0x1] %vm20, 0.0
  %168 = vst.msk [vmem:[#allocation3 + $0x1] sm:$0xff] %vm29, %v153
  %169 = vst.msk [vmem:[#allocation3 + $0x9] sm:$0xff] %vm29, %v156
  %170 = vst.msk [vmem:[#allocation3 + $0x19] sm:$0xff] %vm29, %v159
  %171 = vst.msk [vmem:[#allocation3 + $0x21] sm:$0xff] %vm29, %v162
  %v172 = vld [vmem:[#allocation3] sm:$0xff]
  %v173 = vld [vmem:[#allocation3 + $0x8] sm:$0xff]
  %v174 = vld [vmem:[#allocation3 + $0x18] sm:$0xff]
  %v175 = vld [vmem:[#allocation3 + $0x20] sm:$0xff]
  %v176 = vld [vmem:[#allocation3 + $0x1] sm:$0xff]
  %v177 = vld [vmem:[#allocation3 + $0x9] sm:$0xff]
  %v178 = vld [vmem:[#allocation3 + $0x19] sm:$0xff]
  %v179 = vld [vmem:[#allocation3 + $0x21] sm:$0xff]
  %v180 = vld [vmem:[#allocation3 + $0x2] sm:$0xff]
  %v181 = vld [vmem:[#allocation3 + $0xa] sm:$0xff]
  %v182 = vld [vmem:[#allocation3 + $0x1a] sm:$0xff]
  %v183 = vld [vmem:[#allocation3 + $0x22] sm:$0xff]
  %188 = vrot.lane.b32.xlu0 %v176, 64
  %v189 = vpop.permute.xlu0 %188
  %190 = vrot.lane.b32.xlu0 %v177, 64
  %v191 = vpop.permute.xlu0 %190
  %192 = vrot.lane.b32.xlu0 %v178, 64
  %v193 = vpop.permute.xlu0 %192
  %194 = vrot.lane.b32.xlu0 %v179, 64
  %v195 = vpop.permute.xlu0 %194
  %v200 = vsel %vm29, %v172, %v189
  %v201 = vsel %vm29, %v173, %v191
  %v202 = vsel %vm29, %v174, %v193
  %v203 = vsel %vm29, %v175, %v195
  %v204 = vld [vmem:[%s3] sm:$0xff]
  %v205 = vld [vmem:[%s3 + $0x8] sm:$0xff]
  %v206 = vld [vmem:[%s3 + $0x10] sm:$0xff]
  %v207 = vld [vmem:[%s3 + $0x18] sm:$0xff]
  %v208 = vld [vmem:[%s3 + $0x20] sm:$0xff]
  %v209 = vld [vmem:[%s3 + $0x28] sm:$0xff]
  %v210 = vld [vmem:[%s3 + $0x30] sm:$0xff]
  %v211 = vld [vmem:[%s3 + $0x38] sm:$0xff]
  %v212 = vld [vmem:[%s3 + $0x40] sm:$0xff]
  %v213 = vld [vmem:[%s3 + $0x48] sm:$0xff]
  %v214 = vld [vmem:[%s3 + $0x50] sm:$0xff]
  %v215 = vld [vmem:[%s3 + $0x58] sm:$0xff]
  %v216 = vld [vmem:[%s3 + $0x60] sm:$0xff]
  %v217 = vld [vmem:[%s3 + $0x68] sm:$0xff]
  %v218 = vld [vmem:[%s3 + $0x70] sm:$0xff]
  %v219 = vld [vmem:[%s3 + $0x78] sm:$0xff]
  %v220 = vld [vmem:[%s3 + $0x80] sm:$0xff]
  %v221 = vld [vmem:[%s3 + $0x88] sm:$0xff]
  %v222 = vld [vmem:[%s3 + $0x90] sm:$0xff]
  %v223 = vld [vmem:[%s3 + $0x98] sm:$0xff]
  %v224 = vld [vmem:[%s3 + $0xa0] sm:$0xff]
  %v225 = vld [vmem:[%s3 + $0xa8] sm:$0xff]
  %v226 = vld [vmem:[%s3 + $0xb0] sm:$0xff]
  %v227 = vld [vmem:[%s3 + $0xb8] sm:$0xff]
  %v228 = vld [vmem:[%s4] sm:$0x1]
  %v230 = vperm.slane %v228, 0
  %v233 = vsel %vm29, %v180, 0
  %v236 = vsel %vm29, %v181, 0
  %v239 = vsel %vm29, %v182, 0
  %v242 = vsel %vm29, %v183, 0
  %244 = vmatpush.msra.mxu0 %v219
  %245 = vmatpush.msra.mxu0 %v218
  %246 = vmatpush.msra.mxu0 %v217
  %247 = vmatpush.msra.mxu0 %v216
  %248 = vmatpush.msra.mxu0 %v215
  %249 = vmatpush.msra.mxu0 %v214
  %250 = vmatpush.msra.mxu0 %v213
  %251 = vmatpush.msra.mxu0 %v212
  %252 = vmatpush.msra.mxu0 %v211
  %253 = vmatpush.msra.mxu0 %v210
  %254 = vmatpush.msra.mxu0 %v209
  %255 = vmatpush.msra.mxu0 %v208
  %256 = vmatpush.msra.mxu0 %v207
  %257 = vmatpush.msra.mxu0 %v206
  %258 = vmatpush.msra.mxu0 %v205
  %259 = vmatpush.msra.mxu0 %v204
  %260 = vmatmul.f32.gmra.mxu0 %v200
  %v261 = vpop.f32.mrf.mxu0
  %v262 = vadd.f32 %v230, %v261
  %263 = vmatmul.f32.gmra.mxu0 %v201
  %v264 = vpop.f32.mrf.mxu0
  %v265 = vadd.f32 %v230, %v264
  %266 = vmatmul.f32.gmra.mxu0 %v202
  %v267 = vpop.f32.mrf.mxu0
  %v268 = vadd.f32 %v230, %v267
  %269 = vmatmul.f32.gmra.mxu0 %v203
  %v270 = vpop.f32.mrf.mxu0
  %v271 = vadd.f32 %v230, %v270
  %272 = vdwg.mxu0
  %273 = vmatpush.msra.mxu0 0.0
  %274 = vmatpush.msra.mxu0 0.0
  %275 = vmatpush.msra.mxu0 0.0
  %276 = vmatpush.msra.mxu0 0.0
  %277 = vmatpush.msra.mxu0 0.0
  %278 = vmatpush.msra.mxu0 0.0
  %279 = vmatpush.msra.mxu0 0.0
  %280 = vmatpush.msra.mxu0 0.0
  %281 = vmatpush.msra.mxu0 %v227
  %282 = vmatpush.msra.mxu0 %v226
  %283 = vmatpush.msra.mxu0 %v225
  %284 = vmatpush.msra.mxu0 %v224
  %285 = vmatpush.msra.mxu0 %v223
  %286 = vmatpush.msra.mxu0 %v222
  %287 = vmatpush.msra.mxu0 %v221
  %288 = vmatpush.msra.mxu0 %v220
  %289 = vmatmul.f32.gmra.mxu0 %v233
  %v290 = vpop.f32.mrf.mxu0
  %v291 = vadd.f32 %v262, %v290
  %292 = vmatmul.f32.gmra.mxu0 %v236
  %v293 = vpop.f32.mrf.mxu0
  %v294 = vadd.f32 %v265, %v293
  %295 = vmatmul.f32.gmra.mxu0 %v239
  %v296 = vpop.f32.mrf.mxu0
  %v297 = vadd.f32 %v268, %v296
  %298 = vmatmul.f32.gmra.mxu0 %v242
  %v299 = vpop.f32.mrf.mxu0
  %v300 = vadd.f32 %v271, %v299
  %301 = vdwg.mxu0
  %302 = vst.msk [vmem:[%s5] sm:$0xff] %vm29, %v291
  %303 = vst.msk [vmem:[%s5 + $0x8] sm:$0xff] %vm29, %v294
  %304 = vst.msk [vmem:[%s5 + $0x10] sm:$0xff] %vm29, %v297
  %305 = vst.msk [vmem:[%s5 + $0x18] sm:$0xff] %vm29, %v300
  // Predicated region
  $region22: #{dash_forward.1} parent=0 // pred_check
    _
  $region23: #{dash_forward.1} parent=0 // pred_check_branch
    %307 = sbr.rel (0) target = $region25
  $region24: #{dash_forward.1} parent=0 // pred_region
    _
  $region25: #{dash_forward.1} parent=0 // pred_fallthru
    _
  // Predicated region
  $region26: #{dash_forward.1} parent=0 // pred_check
    _
  $region27: #{dash_forward.1} parent=0 // pred_check_branch
    %309 = sbr.rel (0) target = $region29
  $region28: #{dash_forward.1} parent=0 // pred_region
    _
  $region29: #{dash_forward.1} parent=0 // pred_fallthru
    _

</llo_original>
